<compile_context>
chip_gen: v5e
topology: v5e:2x2
jax: 0.10.0
libtpu: 0.0.40
codegen_flags: <defaults>
</compile_context>

<pallas_src>
import functools

import jax
import jax.numpy as jnp
from jax.experimental import pallas as pl
from jax.experimental.pallas import tpu as pltpu

LANE = 128
SUBLANE = 8
MAX_BLOCK_ROWS = 1024  # sweep 512-2048; 1024 ~= HBM roofline, 4 MiB VMEM @ f32


def _exp_hinge_kernel(pred_ref, tgt_ref, partial_ref, *, n_valid, block_rows):
    i = pl.program_id(0)

    o = pred_ref[...].astype(jnp.float32)
    t = 2.0 * tgt_ref[...].astype(jnp.float32) - 1.0
    score = o * t

    # (score <= 1) * (1 - score) - (score > 1) * exp(-(score - 1))
    # Branches are mutually exclusive -> single select.  Clamp the exp
    # argument so the unselected branch can never overflow to +inf.
    hinge = 1.0 - score
    exp_branch = -jnp.exp(-(jnp.maximum(score, 1.0) - 1.0))
    loss = jnp.where(score <= 1.0, hinge, exp_branch)

    # Zero-out padded / out-of-bounds lanes.  Only the last block has any,
    # but the iota + compare + select is free VPU work under the DMA bound.
    base = i * (block_rows * LANE)
    row = jax.lax.broadcasted_iota(jnp.int32, (block_rows, LANE), 0)
    col = jax.lax.broadcasted_iota(jnp.int32, (block_rows, LANE), 1)
    gidx = base + row * LANE + col
    loss = jnp.where(gidx < n_valid, loss, 0.0)

    # (block_rows, 128) -> (8, 128) partial sums: pure VPU vreg adds,
    # no cross-lane movement inside the kernel.
    partial_ref[...] = loss.reshape(block_rows // SUBLANE, SUBLANE, LANE).sum(axis=0)


def exp_hinge(output, target, reduction='mean'):
    if reduction not in ('mean', 'sum'):
        raise Exception('Sorry, reduction of loss must be mean or sum')
    assert output.shape == target.shape

    n_valid = output.size

    # Flatten (metadata op).  Keep original dtypes -- cast happens in-kernel.
    p_flat = output.reshape(-1)
    t_flat = target.reshape(-1)

    # Pad flat length to a multiple of 8*128 only if necessary (<= 1023 elems).
    chunk = SUBLANE * LANE
    padded = pl.cdiv(n_valid, chunk) * chunk
    pad = padded - n_valid
    if pad:
        p_flat = jnp.pad(p_flat, (0, pad))
        t_flat = jnp.pad(t_flat, (0, pad))

    m_rows = padded // LANE                      # always a multiple of 8
    p2 = p_flat.reshape(m_rows, LANE)
    t2 = t_flat.reshape(m_rows, LANE)

    block_rows = min(MAX_BLOCK_ROWS, m_rows)     # multiple of 8 by construction
    num_blocks = pl.cdiv(m_rows, block_rows)     # last block may be partial

    kernel = functools.partial(_exp_hinge_kernel,
                               n_valid=n_valid, block_rows=block_rows)

    in_spec = pl.BlockSpec((block_rows, LANE), lambda i: (i, 0))
    partials = pl.pallas_call(
        kernel,
        out_shape=jax.ShapeDtypeStruct((num_blocks * SUBLANE, LANE), jnp.float32),
        grid=(num_blocks,),
        in_specs=[in_spec, in_spec],
        out_specs=pl.BlockSpec((SUBLANE, LANE), lambda i: (i, 0)),
        compiler_params=pltpu.CompilerParams(
            dimension_semantics=("parallel",)),   # lets v7x use both TCs
    )(p2, t2)

    total = jnp.sum(partials)
    if reduction == 'mean':
        total = total / jnp.float32(n_valid)
    return total


def exp_hinge_ref(output, target, reduction='mean'):
    t = 2.0 * target - 1.0
    score = output * t
    loss = jnp.where(score <= 1.0, 1.0 - score, 0.0) \
         - jnp.where(score > 1.0, jnp.exp(-(score - 1.0)), 0.0)
    return loss.mean() if reduction == 'mean' else loss.sum()


if __name__ == "__main__":
    key = jax.random.PRNGKey(0)
    k1, k2, k3, k4 = jax.random.split(key, 4)

    # Logit-like outputs and binary targets, NCHW-ish shape (elementwise loss).
    x = jax.random.normal(k1, (2, 4, 16, 16), dtype=jnp.float32) * 2.0
    y = (jax.random.uniform(k2, (2, 4, 16, 16)) > 0.5).astype(jnp.float32)

    got_mean = jax.block_until_ready(exp_hinge(x, y, reduction='mean'))
    got_sum = jax.block_until_ready(exp_hinge(x, y, reduction='sum'))
    want_mean = exp_hinge_ref(x, y, reduction='mean')
    want_sum = exp_hinge_ref(x, y, reduction='sum')
    assert jnp.allclose(got_mean, want_mean, rtol=1e-5, atol=1e-5), (got_mean, want_mean)
    assert jnp.allclose(got_sum, want_sum, rtol=1e-5, atol=1e-4), (got_sum, want_sum)

    # Ragged shape (not a multiple of 8*128) exercises the in-kernel iota mask.
    xr = jax.random.normal(k3, (3, 5, 7), dtype=jnp.float32) * 2.0
    yr = (jax.random.uniform(k4, (3, 5, 7)) > 0.5).astype(jnp.float32)
    got_r = jax.block_until_ready(exp_hinge(xr, yr, reduction='mean'))
    want_r = exp_hinge_ref(xr, yr, reduction='mean')
    assert jnp.allclose(got_r, want_r, rtol=1e-5, atol=1e-5), (got_r, want_r)

    print("KERNEL_OK")
</pallas_src>

<mosaic_0001>
module attributes {stable_mosaic.version = 11 : i64} {
  func.func @_exp_hinge_kernel(%arg0: i32, %arg1: memref<16x128xf32, #tpu.memory_space<vmem>>, %arg2: memref<16x128xf32, #tpu.memory_space<vmem>>, %arg3: memref<8x128xf32, #tpu.memory_space<vmem>>) attributes {dimension_semantics = [#tpu.dimension_semantics<parallel>], iteration_bounds = array<i64: 1>, scalar_prefetch = 0 : i64, scratch_operands = 0 : i64, tpu.core_type = #tpu.core_type<tc>, window_params = [{transform_indices = @transform_0, window_bounds = array<i64: 16, 128>}, {transform_indices = @transform_1, window_bounds = array<i64: 16, 128>}, {transform_indices = @transform_2, window_bounds = array<i64: 8, 128>}]} {
    %c0 = arith.constant 0 : index
    %c0_0 = arith.constant 0 : index
    %0 = vector.load %arg1[%c0, %c0_0] : memref<16x128xf32, #tpu.memory_space<vmem>>, vector<16x128xf32>
    %c0_1 = arith.constant 0 : index
    %c0_2 = arith.constant 0 : index
    %1 = vector.load %arg2[%c0_1, %c0_2] : memref<16x128xf32, #tpu.memory_space<vmem>>, vector<16x128xf32>
    %cst = arith.constant 2.000000e+00 : f32
    %2 = vector.broadcast %cst : f32 to vector<16x128xf32>
    %3 = arith.mulf %2, %1 : vector<16x128xf32>
    %cst_3 = arith.constant 1.000000e+00 : f32
    %4 = vector.broadcast %cst_3 : f32 to vector<16x128xf32>
    %5 = arith.subf %3, %4 : vector<16x128xf32>
    %6 = arith.mulf %0, %5 : vector<16x128xf32>
    %cst_4 = arith.constant 1.000000e+00 : f32
    %7 = vector.broadcast %cst_4 : f32 to vector<16x128xf32>
    %8 = arith.subf %7, %6 : vector<16x128xf32>
    %cst_5 = arith.constant 1.000000e+00 : f32
    %9 = vector.broadcast %cst_5 : f32 to vector<16x128xf32>
    %10 = arith.maximumf %6, %9 : vector<16x128xf32>
    %cst_6 = arith.constant 1.000000e+00 : f32
    %11 = vector.broadcast %cst_6 : f32 to vector<16x128xf32>
    %12 = arith.subf %10, %11 : vector<16x128xf32>
    %cst_7 = arith.constant 0.000000e+00 : f32
    %13 = vector.broadcast %cst_7 : f32 to vector<16x128xf32>
    %14 = arith.subf %13, %12 : vector<16x128xf32>
    %15 = math.exp %14 : vector<16x128xf32>
    %cst_8 = arith.constant 0.000000e+00 : f32
    %16 = vector.broadcast %cst_8 : f32 to vector<16x128xf32>
    %17 = arith.subf %16, %15 : vector<16x128xf32>
    %cst_9 = arith.constant 1.000000e+00 : f32
    %18 = vector.broadcast %cst_9 : f32 to vector<16x128xf32>
    %19 = arith.cmpf ole, %6, %18 : vector<16x128xf32>
    %20 = arith.select %19, %8, %17 : vector<16x128xi1>, vector<16x128xf32>
    %c2048_i32 = arith.constant 2048 : i32
    %21 = arith.muli %arg0, %c2048_i32 : i32
    %22 = tpu.iota {dimensions = array<i32: 0>} : vector<16x128xi32>
    %23 = tpu.iota {dimensions = array<i32: 1>} : vector<16x128xi32>
    %c128_i32 = arith.constant 128 : i32
    %24 = vector.broadcast %c128_i32 : i32 to vector<16x128xi32>
    %25 = arith.muli %22, %24 : vector<16x128xi32>
    %26 = vector.broadcast %21 : i32 to vector<16x128xi32>
    %27 = arith.addi %26, %25 : vector<16x128xi32>
    %28 = arith.addi %27, %23 : vector<16x128xi32>
    %c2048_i32_10 = arith.constant 2048 : i32
    %29 = vector.broadcast %c2048_i32_10 : i32 to vector<16x128xi32>
    %30 = arith.cmpi slt, %28, %29 : vector<16x128xi32>
    %cst_11 = arith.constant 0.000000e+00 : f32
    %31 = vector.broadcast %cst_11 : f32 to vector<16x128xf32>
    %32 = arith.select %30, %20, %31 : vector<16x128xi1>, vector<16x128xf32>
    %33 = vector.shape_cast %32 : vector<16x128xf32> to vector<2x8x128xf32>
    %cst_12 = arith.constant dense<0.000000e+00> : vector<8x128xf32>
    %34 = vector.multi_reduction <add>, %33, %cst_12 [0] : vector<2x8x128xf32> to vector<8x128xf32>
    %c0_13 = arith.constant 0 : index
    %c0_14 = arith.constant 0 : index
    %35 = vector.load %arg3[%c0_13, %c0_14] : memref<8x128xf32, #tpu.memory_space<vmem>>, vector<8x128xf32>
    tpu.vector_store %arg3[%c0_13, %c0_14], %34 {strides = array<i32>} : memref<8x128xf32, #tpu.memory_space<vmem>>, vector<8x128xf32>,
    return
  }
  func.func @transform_0(%arg0: i32) -> (i32, i32) {
    %c0_i32 = arith.constant 0 : i32
    %c0_i32_0 = arith.constant 0 : i32
    return %arg0, %c0_i32 : i32, i32
  }
  func.func @transform_1(%arg0: i32) -> (i32, i32) {
    %c0_i32 = arith.constant 0 : i32
    %c0_i32_0 = arith.constant 0 : i32
    return %arg0, %c0_i32 : i32, i32
  }
  func.func @transform_2(%arg0: i32) -> (i32, i32) {
    %c0_i32 = arith.constant 0 : i32
    %c0_i32_0 = arith.constant 0 : i32
    return %arg0, %c0_i32 : i32, i32
  }
}

</mosaic_0001>

<llo_original>
// kernel: tpu_custom_call.1
$region0: #{tpu_custom_call.1}
  #allocation0 [shape = 'u32[]', space=smem, size = 0x4, offset = 0x4, fixed_abs, tag = 'smem constant byte address 0x4 - core index']
  #allocation1 [shape = 'u32[72,128]{1,0:T(1,128)}', space=vmem, size = 0x9000, scoped, tag = 'internal scratch']
  %s0 = inlined_call_operand.hbm [shape: f32[16,128], index: 0, kind: input, shape index: {}]
  %s1 = inlined_call_operand.hbm [shape: f32[16,128], index: 1, kind: input, shape index: {}]
  %s2 = inlined_call_operand.hbm [shape: f32[8,128], index: 2, kind: output, shape index: {}]
  %s3 = sld [smem:[#allocation0]]
  $region26: #{tpu_custom_call.1} parent=0
    _
  %s5 = ssub.s32 1, %s3
  %s6 = scalar_select 0, %s5, %s3
  $region1: #{tpu_custom_call.1} parent=0
    #allocation2 [shape = 'u8[8192]{0}', space=vmem, size = 0x2000, scoped, tag = 'input window, operand 0, single buffered']
    #allocation3 [shape = 's32[1]{0}', space=sflag, size = 0x4, scoped, tag = 'scoped memory for tpu_custom_call.1']
    #allocation4 [shape = 's32[1]{0}', space=sflag, size = 0x4, scoped, tag = 'scoped memory for tpu_custom_call.1']
    #allocation5 [shape = 'u8[8192]{0}', space=vmem, size = 0x2000, scoped, tag = 'input window, operand 1, single buffered']
    #allocation6 [shape = 's32[1]{0}', space=sflag, size = 0x4, scoped, tag = 'scoped memory for tpu_custom_call.1']
    #allocation7 [shape = 'u8[4096]{0}', space=vmem, size = 0x1000, scoped, tag = 'output window, operand 0, single buffered']
    %7 = vsyncpa [#allocation3], 0
    %8 = vsyncpa [#allocation6], 0
    %9 = vsyncpa [#allocation4], 0
    // Predicated region
    $region2: #{tpu_custom_call.1} parent=1 // pred_check
      _
    $region3: #{tpu_custom_call.1} parent=1 // pred_check_branch
      %11 = sbr.rel (0) target = $region5
    $region4: #{tpu_custom_call.1} parent=1 // pred_region
      %13 = vsyncadd [#allocation3], 0
      %s14 = sshll.u32 %s0, 4
      %s15 = int_to_ptr.hbm [resolvable:$true] %s14
      %s16 = sshll.u32 [#allocation2], 4
      %s17 = int_to_ptr.vmem [resolvable:$true] %s16
      %22 = dma.hbm_to_vmem [thread:$0]  %s15, 256, %s17, [#allocation3], 128, 128, 8
    $region5: #{tpu_custom_call.1} parent=1 // pred_fallthru
      _
    // Predicated region
    $region6: #{tpu_custom_call.1} parent=1 // pred_check
      _
    $region7: #{tpu_custom_call.1} parent=1 // pred_check_branch
      %24 = sbr.rel (0) target = $region9
    $region8: #{tpu_custom_call.1} parent=1 // pred_region
      %26 = vsyncadd [#allocation6], 0
      %s27 = sshll.u32 %s1, 4
      %s28 = int_to_ptr.hbm [resolvable:$true] %s27
      %s29 = sshll.u32 [#allocation5], 4
      %s30 = int_to_ptr.vmem [resolvable:$true] %s29
      %35 = dma.hbm_to_vmem [thread:$0]  %s28, 256, %s30, [#allocation6], 128, 128, 8
    $region9: #{tpu_custom_call.1} parent=1 // pred_fallthru
      _
    // Predicated region
    $region10: #{tpu_custom_call.1} parent=1 // pred_check
      _
    $region11: #{tpu_custom_call.1} parent=1 // pred_check_branch
      %37 = sbr.rel (0) target = $region13
    $region12: #{tpu_custom_call.1} parent=1 // pred_region
      %39 = dma.done [#allocation3], 256
    $region13: #{tpu_custom_call.1} parent=1 // pred_fallthru
      _
    // Predicated region
    $region14: #{tpu_custom_call.1} parent=1 // pred_check
      _
    $region15: #{tpu_custom_call.1} parent=1 // pred_check_branch
      %41 = sbr.rel (0) target = $region17
    $region16: #{tpu_custom_call.1} parent=1 // pred_region
      %43 = dma.done [#allocation6], 256
    $region17: #{tpu_custom_call.1} parent=1 // pred_fallthru
      _
    %v44 = vld [vmem:[#allocation2] sm:$0xff]
    %v45 = vld [vmem:[#allocation2 + $0x8] sm:$0xff]
    %v46 = vld [vmem:[#allocation5] sm:$0xff]
    %v47 = vld [vmem:[#allocation5 + $0x8] sm:$0xff]
    %v48 = vmul.f32 %v46, 2.0
    %v49 = vmul.f32 %v47, 2.0
    %v50 = vsub.f32 %v48, 1.0
    %v51 = vsub.f32 %v49, 1.0
    %v52 = vmul.f32 %v44, %v50
    %v53 = vmul.f32 %v45, %v51
    %v54 = vsub.f32 1.0, %v52
    %v55 = vsub.f32 1.0, %v53
    %v56 = vmax.f32 %v52, 1.0
    %v57 = vmax.f32 %v53, 1.0
    %v58 = vsub.f32 %v56, 1.0
    %v59 = vsub.f32 %v57, 1.0
    %v60 = vsub.f32 0.0, %v58
    %v61 = vsub.f32 0.0, %v59
    %v62 = vmul.f32 %v60, 1.442695
    %v63 = vpow.pop %v62
    %v64 = vmul.f32 %v61, 1.442695
    %v65 = vpow.pop %v64
    %v66 = vsub.f32 0.0, %v63
    %v67 = vsub.f32 0.0, %v65
    %vm68 = vcmp.le.f32.partialorder %v52, 1.0
    %vm69 = vcmp.le.f32.partialorder %v53, 1.0
    %v70 = vsel %vm68, %v54, %v66
    %v71 = vsel %vm69, %v55, %v67
    %s72 = smul.u32 0, 2048
    %v73 = vlaneseq
    %v74 = vshrl.u32 %v73, 7
    %v75 = vadd.s32 %v74, 8
    %v76 = vlaneseq
    %v77 = vand.u32 %v76, 127
    %v78 = vmul.u32 %v74, 128
    %v79 = vmul.u32 %v75, 128
    %v80 = vstv %s72
    %v81 = vadd.s32 %v80, %v78
    %v82 = vadd.s32 %v80, %v79
    %v83 = vadd.s32 %v81, %v77
    %v84 = vadd.s32 %v82, %v77
    %vm85 = vcmp.lt.s32.totalorder %v83, 2048
    %vm86 = vcmp.lt.s32.totalorder %v84, 2048
    %v87 = vsel %vm85, %v70, 0.0
    %v88 = vsel %vm86, %v71, 0.0
    %v89 = vadd.f32 %v87, %v88
    %90 = vst [vmem:[#allocation7] sm:$0xff] %v89
    // Predicated region
    $region18: #{tpu_custom_call.1} parent=1 // pred_check
      _
    $region19: #{tpu_custom_call.1} parent=1 // pred_check_branch
      %92 = sbr.rel (0) target = $region21
    $region20: #{tpu_custom_call.1} parent=1 // pred_region
      %94 = vsyncadd [#allocation4], 0
      %s96 = sshll.u32 [#allocation7], 4
      %s97 = int_to_ptr.vmem [resolvable:$true] %s96
      %s98 = sshll.u32 %s2, 4
      %s99 = int_to_ptr.hbm [resolvable:$true] %s98
      %101 = dma.vmem_to_hbm [thread:$0]  %s97, 128, %s99, [#allocation4]
    $region21: #{tpu_custom_call.1} parent=1 // pred_fallthru
      _
    // Predicated region
    $region22: #{tpu_custom_call.1} parent=1 // pred_check
      _
    $region23: #{tpu_custom_call.1} parent=1 // pred_check_branch
      %103 = sbr.rel (0) target = $region25
    $region24: #{tpu_custom_call.1} parent=1 // pred_region
      %105 = dma.done [#allocation4], 128
    $region25: #{tpu_custom_call.1} parent=1 // pred_fallthru
      _
    %106 = vsyncpa [#allocation3], 1
    %107 = vsyncpa [#allocation6], 1
    %108 = vsyncpa [#allocation4], 1

</llo_original>
